<compile_context>
chip_gen: v5e
topology: v5e:2x2
jax: 0.10.0
libtpu: 0.0.40
codegen_flags: <defaults>
</compile_context>

<pallas_src>
import jax
import jax.numpy as jnp
from jax.experimental import pallas as pl
from jax.experimental.pallas import tpu as pltpu


_LANE = 512        # last-dim width: multiple of 128 -> lane-dense, unmasked stores
_TILE_ROWS = 512   # rows per block: 2 bufs x (in + out) x 512x512xf32 = 4 MiB in VMEM


def _sparse_kernel(k_ref, x_ref, o_ref):
    # k_ref: (1,) float32 in SMEM (scalar prefetch); x_ref / o_ref: VMEM tiles.
    k = k_ref[0]
    x = x_ref[...]
    # torch.where(|X| < k, 0, X): strict '<'; NaNs compare False -> kept, matching torch.
    o_ref[...] = jnp.where(jnp.abs(x).astype(jnp.float32) < k, 0, x)


def sparse_threshold(x_flat: jax.Array, k: float, *, lane: int = _LANE,
                     tile_rows: int = _TILE_ROWS) -> jax.Array:
    """Apply |x| < k -> 0 on a flat array via a tiled, pipelined Pallas kernel."""
    n = x_flat.shape[0]
    dtype = x_flat.dtype

    # Lane-dense slab: pad the flat length up to a multiple of `lane` (128-aligned).
    n_pad = pl.cdiv(n, lane) * lane
    if n_pad != n:
        x_flat = jnp.pad(x_flat, (0, n_pad - n))
    rows = n_pad // lane
    x2 = x_flat.reshape(rows, lane)

    # Row tile: full extent for small inputs (always legal), else an (8,128)-aligned
    # 512-row tile so BlockSpec double-buffers and overlaps DMA with compute.
    tr = rows if rows <= tile_rows else tile_rows
    grid = (pl.cdiv(rows, tr),)

    # Threshold always travels as f32 through SMEM (no bf16 quantization of k).
    k_arr = jnp.asarray([k], dtype=jnp.float32)

    itemsize = jnp.dtype(dtype).itemsize
    cost = pl.CostEstimate(
        flops=2 * n_pad,                            # abs + compare per element (tiny)
        transcendentals=0,
        bytes_accessed=2 * n_pad * itemsize + 4,    # read x + write out (+ k scalar)
    )

    y2 = pl.pallas_call(
        _sparse_kernel,
        out_shape=jax.ShapeDtypeStruct((rows, lane), dtype),
        grid_spec=pltpu.PrefetchScalarGridSpec(
            num_scalar_prefetch=1,
            grid=grid,
            in_specs=[pl.BlockSpec((tr, lane), lambda i, k_ref: (i, 0))],
            out_specs=pl.BlockSpec((tr, lane), lambda i, k_ref: (i, 0)),
        ),
        compiler_params=pltpu.CompilerParams(
            dimension_semantics=("parallel",),      # megacore / v7x dual-TC sharding
        ),
        cost_estimate=cost,
    )(k_arr, x2)

    return y2.reshape(-1)[:n]


class Sparse:
    """JAX/Pallas port of the PyTorch Sparse module (stateful last_k schedule)."""

    def __init__(self, dataset=None):
        self.dataset = dataset
        self.last_k = 0

    def get_k(self, epoch, l0_norm):
        l0_norm_threshold = 40
        start = 250
        maximum = 1
        end = 500
        minimum = 0
        if l0_norm <= l0_norm_threshold:
            return self.last_k
        if epoch < start:
            return minimum
        elif epoch > end:
            return maximum
        else:
            return (epoch - start) * (maximum / (end - start))

    def forward(self, X, epoch, l0_norm):
        # Scalar schedule logic (pure Python, matches the torch module exactly).
        self.last_k = self.get_k(epoch, l0_norm)
        shape = X.shape
        y_flat = sparse_threshold(X.reshape(-1), float(self.last_k))
        return y_flat.reshape(shape)

    __call__ = forward


if __name__ == "__main__":
    key = jax.random.PRNGKey(0)

    # --- Main path: small NCHW activation ------------------------------------
    B, C, H, W = 2, 4, 16, 16
    X = jax.random.normal(key, (B, C, H, W), dtype=jnp.float32)

    mod = Sparse(dataset=None)

    # epoch in the ramp region, l0_norm above the threshold -> k = (300-250)/250 = 0.2
    epoch, l0_norm = 300, 100
    Y = jax.block_until_ready(mod(X, epoch, l0_norm))

    k = mod.last_k
    Y_ref = jnp.where(jnp.abs(X) < k, 0.0, X)
    assert Y.shape == X.shape and Y.dtype == X.dtype
    assert bool(jnp.allclose(Y, Y_ref)), "mismatch vs reference"

    # Stateful path: l0_norm below threshold keeps last_k
    Y2 = jax.block_until_ready(mod(X, 10, 5))
    assert mod.last_k == k
    assert bool(jnp.allclose(Y2, Y_ref))

    # --- Multi-block / padding path: non-128-multiple element count ----------
    key2 = jax.random.PRNGKey(0)
    Z = jax.random.normal(key2, (2, 3, 25, 25), dtype=jnp.float32)  # 3750 elems
    kz = 0.5
    Zf = Z.reshape(-1)
    Yz = jax.block_until_ready(
        sparse_threshold(Zf, kz, lane=128, tile_rows=8)  # padded + partial last block
    )
    Yz_ref = jnp.where(jnp.abs(Zf) < kz, 0.0, Zf)
    assert bool(jnp.allclose(Yz, Yz_ref)), "mismatch on multi-block path"

    print("KERNEL_OK")
</pallas_src>

<mosaic_0001>
module attributes {stable_mosaic.version = 11 : i64} {
  func.func @_sparse_kernel(%arg0: i32, %arg1: memref<1xf32, #tpu.memory_space<smem>>, %arg2: memref<4x512xf32, #tpu.memory_space<vmem>>, %arg3: memref<4x512xf32, #tpu.memory_space<vmem>>) attributes {dimension_semantics = [#tpu.dimension_semantics<parallel>], iteration_bounds = array<i64: 1>, scalar_prefetch = 1 : i64, scratch_operands = 0 : i64, tpu.core_type = #tpu.core_type<tc>, window_params = [{transform_indices = @transform_0, window_bounds = array<i64: 4, 512>}, {transform_indices = @transform_1, window_bounds = array<i64: 4, 512>}]} {
    %c0 = arith.constant 0 : index
    %0 = memref.load %arg1[%c0] : memref<1xf32, #tpu.memory_space<smem>>
    %c0_0 = arith.constant 0 : index
    %c0_1 = arith.constant 0 : index
    %1 = vector.load %arg2[%c0_0, %c0_1] : memref<4x512xf32, #tpu.memory_space<vmem>>, vector<4x512xf32>
    %2 = math.absf %1 : vector<4x512xf32>
    %3 = vector.broadcast %0 : f32 to vector<4x512xf32>
    %4 = arith.cmpf olt, %2, %3 : vector<4x512xf32>
    %c0_i32 = arith.constant 0 : i32
    %5 = arith.sitofp %c0_i32 : i32 to f32
    %6 = vector.broadcast %5 : f32 to vector<4x512xf32>
    %7 = arith.select %4, %6, %1 : vector<4x512xi1>, vector<4x512xf32>
    %c0_2 = arith.constant 0 : index
    %c0_3 = arith.constant 0 : index
    %8 = vector.load %arg3[%c0_2, %c0_3] : memref<4x512xf32, #tpu.memory_space<vmem>>, vector<4x512xf32>
    tpu.vector_store %arg3[%c0_2, %c0_3], %7 {strides = array<i32>} : memref<4x512xf32, #tpu.memory_space<vmem>>, vector<4x512xf32>,
    return
  }
  func.func @transform_0(%arg0: i32, %arg1: memref<1xf32, #tpu.memory_space<smem>>) -> (i32, i32) {
    %c0_i32 = arith.constant 0 : i32
    %c0_i32_0 = arith.constant 0 : i32
    return %arg0, %c0_i32 : i32, i32
  }
  func.func @transform_1(%arg0: i32, %arg1: memref<1xf32, #tpu.memory_space<smem>>) -> (i32, i32) {
    %c0_i32 = arith.constant 0 : i32
    %c0_i32_0 = arith.constant 0 : i32
    return %arg0, %c0_i32 : i32, i32
  }
}

</mosaic_0001>

<llo_original>
// kernel: tpu_custom_call.1
$region0: #{tpu_custom_call.1}
  #allocation0 [shape = 'u32[]', space=smem, size = 0x4, offset = 0x4, fixed_abs, tag = 'smem constant byte address 0x4 - core index']
  #allocation1 [shape = 'u32[72,128]{1,0:T(1,128)}', space=vmem, size = 0x9000, scoped, tag = 'internal scratch']
  #allocation2 [shape = 's32[1]{0}', space=sflag, size = 0x4, scoped, tag = 'scoped memory for tpu_custom_call.1']
  #allocation3 [shape = 'f32[1]{0:T(128)S(6)}', space=smem, size = 0x200, scoped, tag = 'prefetched SMEM operand 0']
  %s0 = inlined_call_operand.<no memory space> [shape: f32[1], index: 0, kind: input, shape index: {}]
  %s1 = inlined_call_operand.hbm [shape: f32[4,512], index: 1, kind: input, shape index: {}]
  %s2 = inlined_call_operand.hbm [shape: f32[4,512], index: 2, kind: output, shape index: {}]
  %s3 = sld [smem:[#allocation0]]
  $region18: #{tpu_custom_call.1} parent=0
    _
  %s5 = ssub.s32 1, %s3
  %s6 = scalar_select 0, %s5, %s3
  %7 = sst [smem:[#allocation3]] %s0
  $region1: #{tpu_custom_call.1} parent=0
    #allocation4 [shape = 'u8[8192]{0}', space=vmem, size = 0x2000, scoped, tag = 'input window, operand 1, single buffered']
    #allocation5 [shape = 's32[1]{0}', space=sflag, size = 0x4, scoped, tag = 'scoped memory for tpu_custom_call.1']
    #allocation6 [shape = 's32[1]{0}', space=sflag, size = 0x4, scoped, tag = 'scoped memory for tpu_custom_call.1']
    #allocation7 [shape = 'u8[8192]{0}', space=vmem, size = 0x2000, scoped, tag = 'output window, operand 0, single buffered']
    %8 = vsyncpa [#allocation5], 0
    %9 = vsyncpa [#allocation6], 0
    // Predicated region
    $region2: #{tpu_custom_call.1} parent=1 // pred_check
      _
    $region3: #{tpu_custom_call.1} parent=1 // pred_check_branch
      %11 = sbr.rel (0) target = $region5
    $region4: #{tpu_custom_call.1} parent=1 // pred_region
      %13 = vsyncadd [#allocation5], 0
      %s15 = sshll.u32 %s1, 4
      %s16 = int_to_ptr.hbm [resolvable:$true] %s15
      %s17 = sshll.u32 [#allocation4], 4
      %s18 = int_to_ptr.vmem [resolvable:$true] %s17
      %20 = dma.hbm_to_vmem [thread:$0]  %s16, 256, %s18, [#allocation5]
    $region5: #{tpu_custom_call.1} parent=1 // pred_fallthru
      _
    // Predicated region
    $region6: #{tpu_custom_call.1} parent=1 // pred_check
      _
    $region7: #{tpu_custom_call.1} parent=1 // pred_check_branch
      %22 = sbr.rel (0) target = $region9
    $region8: #{tpu_custom_call.1} parent=1 // pred_region
      %24 = dma.done [#allocation5], 256
    $region9: #{tpu_custom_call.1} parent=1 // pred_fallthru
      _
    %s25 = sld [smem:[#allocation3]]
    %v26 = vld [vmem:[#allocation4] sm:$0xff]
    %v27 = vld [vmem:[#allocation4 + $0x8] sm:$0xff]
    %v28 = vand.u32 2147483647, %v26
    %v29 = vand.u32 2147483647, %v27
    %v30 = vstv %s25
    %vm31 = vcmp.lt.f32.partialorder %v28, %v30
    %vm32 = vcmp.lt.f32.partialorder %v29, %v30
    %v33 = vsel %vm31, 0.0, %v26
    %v34 = vsel %vm32, 0.0, %v27
    %35 = vst [vmem:[#allocation7] sm:$0xff] %v33
    %36 = vst [vmem:[#allocation7 + $0x8] sm:$0xff] %v34
    // Predicated region
    $region10: #{tpu_custom_call.1} parent=1 // pred_check
      _
    $region11: #{tpu_custom_call.1} parent=1 // pred_check_branch
      %38 = sbr.rel (0) target = $region13
    $region12: #{tpu_custom_call.1} parent=1 // pred_region
      %40 = vsyncadd [#allocation6], 0
      %s42 = sshll.u32 [#allocation7], 4
      %s43 = int_to_ptr.vmem [resolvable:$true] %s42
      %s44 = sshll.u32 %s2, 4
      %s45 = int_to_ptr.hbm [resolvable:$true] %s44
      %47 = dma.vmem_to_hbm [thread:$0]  %s43, 256, %s45, [#allocation6]
    $region13: #{tpu_custom_call.1} parent=1 // pred_fallthru
      _
    // Predicated region
    $region14: #{tpu_custom_call.1} parent=1 // pred_check
      _
    $region15: #{tpu_custom_call.1} parent=1 // pred_check_branch
      %49 = sbr.rel (0) target = $region17
    $region16: #{tpu_custom_call.1} parent=1 // pred_region
      %51 = dma.done [#allocation6], 256
    $region17: #{tpu_custom_call.1} parent=1 // pred_fallthru
      _
    %52 = vsyncpa [#allocation5], 1
    %53 = vsyncpa [#allocation6], 1

</llo_original>
